<compile_context>
chip_gen: v7x
topology: tpu7x:2x2x1
jax: 0.10.0
libtpu: 0.0.40
codegen_flags: <defaults>
</compile_context>

<pallas_src>
import functools

import jax
import jax.numpy as jnp
from jax.experimental import pallas as pl
from jax.experimental.pallas import tpu as pltpu

NUM_CLASSES = 6   # ENZYMES has 6 classes
F_IN = 21         # use_node_attr=True -> 18 attrs + 3 node-label one-hots
H1 = 24           # fc1: Linear(21, 24)  (fused away at runtime)
H2 = 16           # conv1: GCNConv(24, 16)
LANE = 128        # pad the class axis to a full vreg lane width
TILE_N = 128      # node-axis row tile (block-diagonal path)


def _fused_gcn_kernel(x_ref, a_ref, w12_ref, bias_ref, w3_ref, b3_ref, out_ref):
    """out = log_softmax(A@(relu(A@(trunc(x)@W12 + b1@W2) + b_conv1)@W3) + b_conv2).

    The whole two-layer forward runs on one row tile.  This is exact because
    `a_ref` is either the full adjacency (dense path, grid of 1) or the tile's
    own diagonal block (block-diagonal path: no graph straddles a tile
    boundary, so every node's multi-hop neighborhood stays inside the tile).
    """
    # Emulate PyTorch x.long(): truncate toward zero (exact for |x| < 2**31).
    x = x_ref[...].astype(jnp.int32).astype(jnp.float32)
    a = a_ref[...]                                              # bf16 (tn, tn)

    # ---- layer 1: fc1 algebraically fused into conv1's weight transform ----
    z1 = jnp.dot(x.astype(jnp.bfloat16), w12_ref[...],
                 preferred_element_type=jnp.float32)            # (tn, H2)
    z1 = z1 + bias_ref[0:1, :]                                  # b1@W2: BEFORE aggregation
    h1 = jnp.dot(a, z1.astype(jnp.bfloat16),
                 preferred_element_type=jnp.float32)            # (tn, H2)
    h1 = jnp.maximum(h1 + bias_ref[1:2, :], 0.0)                # conv1 bias + ReLU
    # F.dropout(training=False) is the identity in eval mode.
    # TODO(synk): training-mode dropout (p=0.5) would use pltpu.prng_seed/prng_random_bits.

    # ---- layer 2: conv2, classes padded to a full 128-lane vreg ----
    z2 = jnp.dot(h1.astype(jnp.bfloat16), w3_ref[...],
                 preferred_element_type=jnp.float32)            # (tn, LANE)
    h2 = jnp.dot(a, z2.astype(jnp.bfloat16),
                 preferred_element_type=jnp.float32)            # (tn, LANE)
    h2 = h2 + b3_ref[...]

    # Masked log_softmax over the real NUM_CLASSES lanes (padded lanes ignored;
    # their h2 is exactly 0, so no Inf/NaN is generated on the masked lanes).
    lane = jax.lax.broadcasted_iota(jnp.int32, h2.shape, 1)
    valid = lane < NUM_CLASSES
    m = jnp.max(jnp.where(valid, h2, -jnp.inf), axis=-1, keepdims=True)
    s = h2 - m
    e = jnp.where(valid, jnp.exp(s), 0.0)
    lse = jnp.log(jnp.sum(e, axis=-1, keepdims=True))
    out_ref[...] = s - lse


def build_normalized_adjacency(edge_index, num_nodes):
    """Dense D^-1/2 (A + I) D^-1/2, matching PyG GCNConv with add_self_loops (f32)."""
    src = edge_index[0]
    dst = edge_index[1]
    a = jnp.zeros((num_nodes, num_nodes), dtype=jnp.float32)
    # message flows src -> dst, so the aggregation matrix is A[dst, src]
    a = a.at[dst, src].add(1.0)
    a = a + jnp.eye(num_nodes, dtype=jnp.float32)      # self loops
    deg = jnp.sum(a, axis=1)
    d_inv_sqrt = jnp.where(deg > 0, 1.0 / jnp.sqrt(deg), 0.0)
    return a * d_inv_sqrt[:, None] * d_inv_sqrt[None, :]


@functools.partial(jax.jit, static_argnames=("block_diagonal_tiles",))
def gcn_forward(x, a_bf16, w1, b1, w2, b2, w3, b3, *, block_diagonal_tiles=False):
    """Fused two-layer GCN forward.

    `a_bf16` is the normalized adjacency already cast to bf16 (cast once by the
    caller, not per forward).  If `block_diagonal_tiles` is True the caller
    guarantees the node packing is block-diagonal and tile-aligned (no graph
    crosses a TILE_N boundary), enabling diagonal-only A blocks.
    """
    n = x.shape[0]

    # fc1 has no nonlinearity before conv1, so fold it into conv1's transform:
    #   conv1(fc1(x)) = A @ (x @ (W1@W2) + b1@W2) + b_conv1
    w12 = jnp.dot(w1, w2).astype(jnp.bfloat16)                          # (F_IN, H2)
    b12 = jnp.dot(b1, w2)                                               # (1, H2)
    bias_pack = jnp.concatenate([b12, b2], axis=0).astype(jnp.float32)  # (2, H2)

    # Pad conv2's 6 output classes to 128 lanes -> unmasked lane-dense stores.
    w3p = jnp.zeros((H2, LANE), jnp.float32).at[:, :NUM_CLASSES].set(w3)
    w3p = w3p.astype(jnp.bfloat16)
    b3p = jnp.zeros((1, LANE), jnp.float32).at[:, :NUM_CLASSES].set(b3)

    use_diag = block_diagonal_tiles and n > TILE_N and n % TILE_N == 0
    if use_diag:
        tn, grid_n = TILE_N, n // TILE_N
        a_index_map = lambda i: (i, i)        # only this tile's diagonal block of A
    else:
        # Dense fallback: whole graph in one grid step, A resident in VMEM once.
        # TODO(synk): very large non-block-diagonal graphs would need a K-tiled
        # accumulator variant (column grid axis + f32 scratch); not needed here.
        tn, grid_n = n, 1
        a_index_map = lambda i: (0, 0)

    out_padded = pl.pallas_call(
        _fused_gcn_kernel,
        out_shape=jax.ShapeDtypeStruct((n, LANE), jnp.float32),
        grid=(grid_n,),
        in_specs=[
            pl.BlockSpec((tn, F_IN), lambda i: (i, 0)),     # x: row tile (no redundancy)
            pl.BlockSpec((tn, tn), a_index_map),            # A_hat: diagonal block / full
            pl.BlockSpec((F_IN, H2), lambda i: (0, 0)),     # fused W1@W2 (bf16)
            pl.BlockSpec((2, H2), lambda i: (0, 0)),        # packed biases (b1@W2, b_conv1)
            pl.BlockSpec((H2, LANE), lambda i: (0, 0)),     # conv2 weight (lane-padded, bf16)
            pl.BlockSpec((1, LANE), lambda i: (0, 0)),      # conv2 bias (lane-padded)
        ],
        out_specs=pl.BlockSpec((tn, LANE), lambda i: (i, 0)),
        compiler_params=pltpu.CompilerParams(
            dimension_semantics=("parallel",),
            vmem_limit_bytes=32 * 1024 * 1024,
        ),
    )(x, a_bf16, w12, bias_pack, w3p, b3p)

    return out_padded[:, :NUM_CLASSES]


def gcn_reference(x, a_hat_f32, w1, b1, w2, b2, w3, b3):
    """Pure-JAX f32 reference of the PyTorch forward (eval mode)."""
    h = x.astype(jnp.int32).astype(jnp.float32) @ w1 + b1          # fc1(x.long())
    h = a_hat_f32 @ (h @ w2) + b2                                  # conv1
    h = jnp.maximum(h, 0.0)                                        # relu (+ eval dropout = id)
    h = a_hat_f32 @ (h @ w3) + b3                                  # conv2
    return jax.nn.log_softmax(h, axis=-1)


def init_params(key):
    """Deterministic synthetic parameters (PyTorch-Linear-style uniform init)."""
    ks = jax.random.split(key, 6)

    def linear_init(kw, kb, fan_in, fan_out):
        bound = 1.0 / jnp.sqrt(fan_in)
        w = jax.random.uniform(kw, (fan_in, fan_out), jnp.float32, -bound, bound)
        b = jax.random.uniform(kb, (1, fan_out), jnp.float32, -bound, bound)
        return w, b

    w1, b1 = linear_init(ks[0], ks[1], F_IN, H1)          # fc1
    w2, b2 = linear_init(ks[2], ks[3], H1, H2)            # conv1 weight/bias
    w3, b3 = linear_init(ks[4], ks[5], H2, NUM_CLASSES)   # conv2 weight/bias
    return w1, b1, w2, b2, w3, b3


if __name__ == "__main__":
    key = jax.random.PRNGKey(0)
    k_x, k_e, k_p = jax.random.split(key, 3)

    # Batch of 8 ENZYMES-like graphs, 32 nodes each, packed block-diagonally
    # along one node axis (256 nodes -> two 128-node tiles).  No graph straddles
    # a TILE_N boundary, so the diagonal-block fast path is exact.
    graphs, nodes_per_graph = 8, 32
    num_nodes = graphs * nodes_per_graph
    x = jax.random.uniform(k_x, (num_nodes, F_IN), jnp.float32, 0.0, 3.0)

    pairs_per_graph = 48
    e_keys = jax.random.split(k_e, graphs)
    edge_chunks = []
    for g in range(graphs):
        p = jax.random.randint(e_keys[g], (2, pairs_per_graph), 0, nodes_per_graph)
        p = jnp.concatenate([p, jnp.stack([p[1], p[0]])], axis=1)   # undirected
        edge_chunks.append(p + g * nodes_per_graph)
    edge_index = jnp.concatenate(edge_chunks, axis=1).astype(jnp.int32)

    a_hat = build_normalized_adjacency(edge_index, num_nodes)   # f32 (reference copy)
    a_bf16 = a_hat.astype(jnp.bfloat16)                         # cast ONCE, reused every forward
    params = init_params(k_p)

    out_tiled = gcn_forward(x, a_bf16, *params, block_diagonal_tiles=True)
    out_dense = gcn_forward(x, a_bf16, *params, block_diagonal_tiles=False)
    jax.block_until_ready((out_tiled, out_dense))

    assert out_tiled.shape == (num_nodes, NUM_CLASSES)
    # Diagonal-block tiled path must match the dense single-block path.
    assert bool(jnp.max(jnp.abs(out_tiled - out_dense)) < 1e-4)
    # Both must track the f32 pure-JAX reference within bf16 tolerance.
    ref = gcn_reference(x, a_hat, *params)
    assert bool(jnp.max(jnp.abs(out_tiled - ref)) < 1e-1)
    # Rows of log_softmax must exp-sum to ~1.
    row_sums = jnp.sum(jnp.exp(out_tiled), axis=1)
    assert bool(jnp.all(jnp.abs(row_sums - 1.0) < 1e-3))
    print("KERNEL_OK")
</pallas_src>

<mosaic_0001>
module attributes {stable_mosaic.version = 11 : i64} {
  func.func @_fused_gcn_kernel(%arg0: i32, %arg1: memref<128x21xf32, #tpu.memory_space<vmem>>, %arg2: memref<128x128xbf16, #tpu.memory_space<vmem>>, %arg3: memref<21x16xbf16, #tpu.memory_space<vmem>>, %arg4: memref<2x16xf32, #tpu.memory_space<vmem>>, %arg5: memref<16x128xbf16, #tpu.memory_space<vmem>>, %arg6: memref<1x128xf32, #tpu.memory_space<vmem>>, %arg7: memref<128x128xf32, #tpu.memory_space<vmem>>) attributes {dimension_semantics = [#tpu.dimension_semantics<parallel>], iteration_bounds = array<i64: 2>, scalar_prefetch = 0 : i64, scratch_operands = 0 : i64, tpu.core_type = #tpu.core_type<tc>, window_params = [{transform_indices = @transform_0, window_bounds = array<i64: 128, 21>}, {transform_indices = @transform_1, window_bounds = array<i64: 128, 128>}, {pipeline_mode = #tpu.pipeline_mode<synchronous>, transform_indices = @transform_2, window_bounds = array<i64: 21, 16>}, {pipeline_mode = #tpu.pipeline_mode<synchronous>, transform_indices = @transform_3, window_bounds = array<i64: 2, 16>}, {pipeline_mode = #tpu.pipeline_mode<synchronous>, transform_indices = @transform_4, window_bounds = array<i64: 16, 128>}, {pipeline_mode = #tpu.pipeline_mode<synchronous>, transform_indices = @transform_5, window_bounds = array<i64: 1, 128>}, {transform_indices = @transform_6, window_bounds = array<i64: 128, 128>}]} {
    %c0 = arith.constant 0 : index
    %c0_0 = arith.constant 0 : index
    %0 = vector.load %arg1[%c0, %c0_0] : memref<128x21xf32, #tpu.memory_space<vmem>>, vector<128x21xf32>
    %1 = arith.fptosi %0 : vector<128x21xf32> to vector<128x21xi32>
    %2 = arith.sitofp %1 : vector<128x21xi32> to vector<128x21xf32>
    %c0_1 = arith.constant 0 : index
    %c0_2 = arith.constant 0 : index
    %3 = vector.load %arg2[%c0_1, %c0_2] : memref<128x128xbf16, #tpu.memory_space<vmem>>, vector<128x128xbf16>
    %4 = arith.truncf %2 : vector<128x21xf32> to vector<128x21xbf16>
    %c0_3 = arith.constant 0 : index
    %c0_4 = arith.constant 0 : index
    %5 = vector.load %arg3[%c0_3, %c0_4] : memref<21x16xbf16, #tpu.memory_space<vmem>>, vector<21x16xbf16>
    %cst = arith.constant dense<0.000000e+00> : vector<128x16xf32>
    %6 = tpu.matmul %4, %5, %cst {dimension_numbers = #tpu.dot_dimension_numbers<[1], [0], [0], [1], [0, 0, 1, 1], [], []>} : vector<128x21xbf16>, vector<21x16xbf16>, vector<128x16xf32> -> vector<128x16xf32>
    %c0_5 = arith.constant 0 : index
    %c0_6 = arith.constant 0 : index
    %7 = vector.load %arg4[%c0_5, %c0_6] : memref<2x16xf32, #tpu.memory_space<vmem>>, vector<1x16xf32>
    %8 = vector.broadcast %7 : vector<1x16xf32> to vector<128x16xf32>
    %9 = arith.addf %6, %8 : vector<128x16xf32>
    %10 = arith.truncf %9 : vector<128x16xf32> to vector<128x16xbf16>
    %cst_7 = arith.constant dense<0.000000e+00> : vector<128x16xf32>
    %11 = tpu.matmul %3, %10, %cst_7 {dimension_numbers = #tpu.dot_dimension_numbers<[1], [0], [0], [1], [0, 0, 1, 1], [], []>} : vector<128x128xbf16>, vector<128x16xbf16>, vector<128x16xf32> -> vector<128x16xf32>
    %c1 = arith.constant 1 : index
    %c0_8 = arith.constant 0 : index
    %12 = vector.load %arg4[%c1, %c0_8] : memref<2x16xf32, #tpu.memory_space<vmem>>, vector<1x16xf32>
    %13 = vector.broadcast %12 : vector<1x16xf32> to vector<128x16xf32>
    %14 = arith.addf %11, %13 : vector<128x16xf32>
    %cst_9 = arith.constant 0.000000e+00 : f32
    %15 = vector.broadcast %cst_9 : f32 to vector<128x16xf32>
    %16 = arith.maximumf %14, %15 : vector<128x16xf32>
    %17 = arith.truncf %16 : vector<128x16xf32> to vector<128x16xbf16>
    %c0_10 = arith.constant 0 : index
    %c0_11 = arith.constant 0 : index
    %18 = vector.load %arg5[%c0_10, %c0_11] : memref<16x128xbf16, #tpu.memory_space<vmem>>, vector<16x128xbf16>
    %cst_12 = arith.constant dense<0.000000e+00> : vector<128x128xf32>
    %19 = tpu.matmul %17, %18, %cst_12 {dimension_numbers = #tpu.dot_dimension_numbers<[1], [0], [0], [1], [0, 0, 1, 1], [], []>} : vector<128x16xbf16>, vector<16x128xbf16>, vector<128x128xf32> -> vector<128x128xf32>
    %20 = arith.truncf %19 : vector<128x128xf32> to vector<128x128xbf16>
    %cst_13 = arith.constant dense<0.000000e+00> : vector<128x128xf32>
    %21 = tpu.matmul %3, %20, %cst_13 {dimension_numbers = #tpu.dot_dimension_numbers<[1], [0], [0], [1], [0, 0, 1, 1], [], []>} : vector<128x128xbf16>, vector<128x128xbf16>, vector<128x128xf32> -> vector<128x128xf32>
    %c0_14 = arith.constant 0 : index
    %c0_15 = arith.constant 0 : index
    %22 = vector.load %arg6[%c0_14, %c0_15] : memref<1x128xf32, #tpu.memory_space<vmem>>, vector<1x128xf32>
    %23 = vector.broadcast %22 : vector<1x128xf32> to vector<128x128xf32>
    %24 = arith.addf %21, %23 : vector<128x128xf32>
    %25 = tpu.iota {dimensions = array<i32: 1>} : vector<128x128xi32>
    %c6_i32 = arith.constant 6 : i32
    %26 = vector.broadcast %c6_i32 : i32 to vector<128x128xi32>
    %27 = arith.cmpi slt, %25, %26 : vector<128x128xi32>
    %cst_16 = arith.constant 0xFF800000 : f32
    %28 = vector.broadcast %cst_16 : f32 to vector<128x128xf32>
    %29 = arith.select %27, %24, %28 : vector<128x128xi1>, vector<128x128xf32>
    %cst_17 = arith.constant dense<0xFF800000> : vector<128xf32>
    %30 = vector.multi_reduction <maximumf>, %29, %cst_17 [1] : vector<128x128xf32> to vector<128xf32>
    %31 = vector.shape_cast %30 : vector<128xf32> to vector<128x1xf32>
    %32 = vector.broadcast %31 : vector<128x1xf32> to vector<128x128xf32>
    %33 = arith.subf %24, %32 : vector<128x128xf32>
    %34 = math.exp %33 : vector<128x128xf32>
    %cst_18 = arith.constant 0.000000e+00 : f32
    %35 = vector.broadcast %cst_18 : f32 to vector<128x128xf32>
    %36 = arith.select %27, %34, %35 : vector<128x128xi1>, vector<128x128xf32>
    %cst_19 = arith.constant dense<0.000000e+00> : vector<128xf32>
    %37 = vector.multi_reduction <add>, %36, %cst_19 [1] : vector<128x128xf32> to vector<128xf32>
    %38 = vector.shape_cast %37 : vector<128xf32> to vector<128x1xf32>
    %39 = math.log %38 : vector<128x1xf32>
    %40 = vector.broadcast %39 : vector<128x1xf32> to vector<128x128xf32>
    %41 = arith.subf %33, %40 : vector<128x128xf32>
    %c0_20 = arith.constant 0 : index
    %c0_21 = arith.constant 0 : index
    %42 = vector.load %arg7[%c0_20, %c0_21] : memref<128x128xf32, #tpu.memory_space<vmem>>, vector<128x128xf32>
    tpu.vector_store %arg7[%c0_20, %c0_21], %41 {strides = array<i32>} : memref<128x128xf32, #tpu.memory_space<vmem>>, vector<128x128xf32>,
    return
  }
  func.func @transform_0(%arg0: i32) -> (i32, i32) {
    %c0_i32 = arith.constant 0 : i32
    %c0_i32_0 = arith.constant 0 : i32
    return %arg0, %c0_i32 : i32, i32
  }
  func.func @transform_1(%arg0: i32) -> (i32, i32) {
    %c0_i32 = arith.constant 0 : i32
    return %arg0, %arg0 : i32, i32
  }
  func.func @transform_2(%arg0: i32) -> (i32, i32) {
    %c0_i32 = arith.constant 0 : i32
    %c0_i32_0 = arith.constant 0 : i32
    %c0_i32_1 = arith.constant 0 : i32
    return %c0_i32, %c0_i32_0 : i32, i32
  }
  func.func @transform_3(%arg0: i32) -> (i32, i32) {
    %c0_i32 = arith.constant 0 : i32
    %c0_i32_0 = arith.constant 0 : i32
    %c0_i32_1 = arith.constant 0 : i32
    return %c0_i32, %c0_i32_0 : i32, i32
  }
  func.func @transform_4(%arg0: i32) -> (i32, i32) {
    %c0_i32 = arith.constant 0 : i32
    %c0_i32_0 = arith.constant 0 : i32
    %c0_i32_1 = arith.constant 0 : i32
    return %c0_i32, %c0_i32_0 : i32, i32
  }
  func.func @transform_5(%arg0: i32) -> (i32, i32) {
    %c0_i32 = arith.constant 0 : i32
    %c0_i32_0 = arith.constant 0 : i32
    %c0_i32_1 = arith.constant 0 : i32
    return %c0_i32, %c0_i32_0 : i32, i32
  }
  func.func @transform_6(%arg0: i32) -> (i32, i32) {
    %c0_i32 = arith.constant 0 : i32
    %c0_i32_0 = arith.constant 0 : i32
    return %arg0, %c0_i32 : i32, i32
  }
}

</mosaic_0001>

<llo_original>
// kernel: gcn_forward.1
$region0: #{gcn_forward.1}
  #allocation0 [shape = 'u32[]', space=smem, size = 0x4, offset = 0x4, fixed_abs, tag = 'smem constant byte address 0x4 - core index']
  #allocation1 [shape = 'u32[144,128]{1,0:T(1,128)}', space=vmem, size = 0x12000, scoped, tag = 'internal scratch']
  %s0 = inlined_call_operand.vmem [shape: f32[256,21], index: 0, kind: input, shape index: {}]
  %s1 = inlined_call_operand.vmem [shape: bf16[256,256], index: 1, kind: input, shape index: {}]
  %s2 = inlined_call_operand.vmem [shape: bf16[21,16], index: 2, kind: input, shape index: {}]
  %s3 = inlined_call_operand.vmem [shape: f32[2,16], index: 3, kind: input, shape index: {}]
  %s4 = inlined_call_operand.vmem [shape: bf16[16,128], index: 4, kind: input, shape index: {}]
  %s5 = inlined_call_operand.vmem [shape: f32[1,128], index: 5, kind: input, shape index: {}]
  %s6 = inlined_call_operand.vmem [shape: f32[256,128], index: 6, kind: output, shape index: {}]
  %s7 = sld [smem:[#allocation0]]
  $region98: #{gcn_forward.1} parent=0
    _
  %s9 = ssub.s32 1, %s7
  %s10 = scalar_select 0, %s9, %s7
  $region1: #{gcn_forward.1} parent=0
    #allocation2 [shape = 'u8[65536]{0}', space=vmem, size = 0x10000, scoped, tag = 'input window, operand 1']
    loop: start=0, step=1, limit=4
    $region2: #{gcn_forward.1} parent=1 // loop_pre_header
      _
    $region3: #{gcn_forward.1} parent=1 // loop_header
      %s12 = sphi 0, %s16
      %p13 = scmp.ge.s32.totalorder %s12, 4
      %s22 = sphi 0, %s24
      %s25 = sphi 0, %s22
      %s26 = sphi 0, %s25
      %s42 = sphi 0, %s26
      %s50 = sphi 0, %s52
      %s53 = sphi 0, %s50
      %s54 = sphi 0, %s53
      %s70 = sphi 0, %s54
      %s74 = sphi 0, %s74
      %s76 = sphi 0, %s74
      %s77 = sphi 0, %s76
      %s91 = sphi 0, %s77
      %s95 = sphi 0, %s95
      %s97 = sphi 0, %s95
      %s98 = sphi 0, %s97
      %s112 = sphi 0, %s98
      %s116 = sphi 0, %s116
      %s118 = sphi 0, %s116
      %s119 = sphi 0, %s118
      %s133 = sphi 0, %s119
      %s137 = sphi 0, %s137
      %s139 = sphi 0, %s137
      %s140 = sphi 0, %s139
      %s154 = sphi 0, %s140
      %s160 = sphi 0, %s162
      %s163 = sphi 0, %s160
      %s164 = sphi 0, %s163
      %s180 = sphi 0, %s164
    $region4: #{gcn_forward.1} parent=1 // loop_header_branch
      %15 = sbr.rel (%p13) target = $region8
    $region5: #{gcn_forward.1} parent=1 // loop_body
      %s17 = ssub.s32 %s12, 1
      %s18 = ssub.s32 %s12, 2
      %s19 = sadd.s32 %s12, 1
      %s20 = ssub.s32 %s12, %s19
      %p21 = scmp.eq.s32.totalorder %s20, 0
      %s23 = sadd.s32 %s22, 1
      %s24 = scalar_select %p21, %s22, %s23
      %p27 = pneg %p21
      %p28 = scmp.eq.s32.totalorder %s12, 1
      %p29 = por %p27, %p28
      %p30 = scmp.ne.s32.totalorder %s22, %s25
      %p31 = scmp.eq.s32.totalorder %s12, 0
      %p32 = por %p30, %p31
      %p33 = scmp.ne.s32.totalorder %s22, %s25
      %p34 = scmp.eq.s32.totalorder %s17, 1
      %p35 = por %p33, %p34
      %p36 = scmp.ne.s32.totalorder %s25, %s26
      %p37 = scmp.eq.s32.totalorder %s17, 0
      %p38 = por %p36, %p37
      %p39 = scmp.ne.s32.totalorder %s25, %s26
      %p40 = scmp.eq.s32.totalorder %s18, 1
      %p41 = por %p39, %p40
      %p43 = scmp.ne.s32.totalorder %s26, %s42
      %p44 = scmp.eq.s32.totalorder %s18, 0
      %p45 = por %p43, %p44
      %s46 = ssub.s32 %s12, %s19
      %s47 = ssub.s32 %s12, %s19
      %s48 = sor.u32 %s46, %s47
      %p49 = scmp.eq.s32.totalorder %s48, 0
      %s51 = sadd.s32 %s50, 1
      %s52 = scalar_select %p49, %s50, %s51
      %p55 = pneg %p49
      %p56 = scmp.eq.s32.totalorder %s12, 1
      %p57 = por %p55, %p56
      %p58 = scmp.ne.s32.totalorder %s50, %s53
      %p59 = scmp.eq.s32.totalorder %s12, 0
      %p60 = por %p58, %p59
      %p61 = scmp.ne.s32.totalorder %s50, %s53
      %p62 = scmp.eq.s32.totalorder %s17, 1
      %p63 = por %p61, %p62
      %p64 = scmp.ne.s32.totalorder %s53, %s54
      %p65 = scmp.eq.s32.totalorder %s17, 0
      %p66 = por %p64, %p65
      %p67 = scmp.ne.s32.totalorder %s53, %s54
      %p68 = scmp.eq.s32.totalorder %s18, 1
      %p69 = por %p67, %p68
      %p71 = scmp.ne.s32.totalorder %s54, %s70
      %p72 = scmp.eq.s32.totalorder %s18, 0
      %p73 = por %p71, %p72
      %s75 = sadd.s32 %s74, 1
      %p78 = scmp.eq.s32.totalorder %s12, 1
      %p79 = scmp.ne.s32.totalorder %s74, %s76
      %p80 = scmp.eq.s32.totalorder %s12, 0
      %p81 = por %p79, %p80
      %p82 = scmp.ne.s32.totalorder %s74, %s76
      %p83 = scmp.eq.s32.totalorder %s17, 1
      %p84 = por %p82, %p83
      %p85 = scmp.ne.s32.totalorder %s76, %s77
      %p86 = scmp.eq.s32.totalorder %s17, 0
      %p87 = por %p85, %p86
      %p88 = scmp.ne.s32.totalorder %s76, %s77
      %p89 = scmp.eq.s32.totalorder %s18, 1
      %p90 = por %p88, %p89
      %p92 = scmp.ne.s32.totalorder %s77, %s91
      %p93 = scmp.eq.s32.totalorder %s18, 0
      %p94 = por %p92, %p93
      %s96 = sadd.s32 %s95, 1
      %p99 = scmp.eq.s32.totalorder %s12, 1
      %p100 = scmp.ne.s32.totalorder %s95, %s97
      %p101 = scmp.eq.s32.totalorder %s12, 0
      %p102 = por %p100, %p101
      %p103 = scmp.ne.s32.totalorder %s95, %s97
      %p104 = scmp.eq.s32.totalorder %s17, 1
      %p105 = por %p103, %p104
      %p106 = scmp.ne.s32.totalorder %s97, %s98
      %p107 = scmp.eq.s32.totalorder %s17, 0
      %p108 = por %p106, %p107
      %p109 = scmp.ne.s32.totalorder %s97, %s98
      %p110 = scmp.eq.s32.totalorder %s18, 1
      %p111 = por %p109, %p110
      %p113 = scmp.ne.s32.totalorder %s98, %s112
      %p114 = scmp.eq.s32.totalorder %s18, 0
      %p115 = por %p113, %p114
      %s117 = sadd.s32 %s116, 1
      %p120 = scmp.eq.s32.totalorder %s12, 1
      %p121 = scmp.ne.s32.totalorder %s116, %s118
      %p122 = scmp.eq.s32.totalorder %s12, 0
      %p123 = por %p121, %p122
      %p124 = scmp.ne.s32.totalorder %s116, %s118
      %p125 = scmp.eq.s32.totalorder %s17, 1
      %p126 = por %p124, %p125
      %p127 = scmp.ne.s32.totalorder %s118, %s119
      %p128 = scmp.eq.s32.totalorder %s17, 0
      %p129 = por %p127, %p128
      %p130 = scmp.ne.s32.totalorder %s118, %s119
      %p131 = scmp.eq.s32.totalorder %s18, 1
      %p132 = por %p130, %p131
      %p134 = scmp.ne.s32.totalorder %s119, %s133
      %p135 = scmp.eq.s32.totalorder %s18, 0
      %p136 = por %p134, %p135
      %s138 = sadd.s32 %s137, 1
      %p141 = scmp.eq.s32.totalorder %s12, 1
      %p142 = scmp.ne.s32.totalorder %s137, %s139
      %p143 = scmp.eq.s32.totalorder %s12, 0
      %p144 = por %p142, %p143
      %p145 = scmp.ne.s32.totalorder %s137, %s139
      %p146 = scmp.eq.s32.totalorder %s17, 1
      %p147 = por %p145, %p146
      %p148 = scmp.ne.s32.totalorder %s139, %s140
      %p149 = scmp.eq.s32.totalorder %s17, 0
      %p150 = por %p148, %p149
      %p151 = scmp.ne.s32.totalorder %s139, %s140
      %p152 = scmp.eq.s32.totalorder %s18, 1
      %p153 = por %p151, %p152
      %p155 = scmp.ne.s32.totalorder %s140, %s154
      %p156 = scmp.eq.s32.totalorder %s18, 0
      %p157 = por %p155, %p156
      %s158 = ssub.s32 %s12, %s19
      %p159 = scmp.eq.s32.totalorder %s158, 0
      %s161 = sadd.s32 %s160, 1
      %s162 = scalar_select %p159, %s160, %s161
      %p165 = pneg %p159
      %p166 = scmp.eq.s32.totalorder %s12, 1
      %p167 = por %p165, %p166
      %p168 = scmp.ne.s32.totalorder %s160, %s163
      %p169 = scmp.eq.s32.totalorder %s12, 0
      %p170 = por %p168, %p169
      %p171 = scmp.ne.s32.totalorder %s160, %s163
      %p172 = scmp.eq.s32.totalorder %s17, 1
      %p173 = por %p171, %p172
      %p174 = scmp.ne.s32.totalorder %s163, %s164
      %p175 = scmp.eq.s32.totalorder %s17, 0
      %p176 = por %p174, %p175
      %p177 = scmp.ne.s32.totalorder %s163, %s164
      %p178 = scmp.eq.s32.totalorder %s18, 1
      %p179 = por %p177, %p178
      %p181 = scmp.ne.s32.totalorder %s164, %s180
      %p182 = scmp.eq.s32.totalorder %s18, 0
      %p183 = por %p181, %p182
      %p184 = scmp.le.s32.totalorder 1, %s12
      %p185 = scmp.lt.s32.totalorder %s12, 3
      %p186 = pnand %p184, %p185
      %p187 = pneg %p186
      // Predicated region
      $region9: #{gcn_forward.1} parent=5 // pred_check
        _
      $region10: #{gcn_forward.1} parent=5 // pred_check_branch
        %189 = sbr.rel (%p186) target = $region12
      $region11: #{gcn_forward.1} parent=5 // pred_region
        %s190 = ssub.s32 %s12, 1
        // Predicated region
        $region13: #{gcn_forward.1} parent=11 // pred_check
          %p191 = pneg %p87
        $region14: #{gcn_forward.1} parent=11 // pred_check_branch
          %193 = sbr.rel (%p191) target = $region16
        $region15: #{gcn_forward.1} parent=11 // pred_region
          _
        $region16: #{gcn_forward.1} parent=11 // pred_fallthru
          _
        // Predicated region
        $region17: #{gcn_forward.1} parent=11 // pred_check
          %p194 = pneg %p108
        $region18: #{gcn_forward.1} parent=11 // pred_check_branch
          %196 = sbr.rel (%p194) target = $region20
        $region19: #{gcn_forward.1} parent=11 // pred_region
          _
        $region20: #{gcn_forward.1} parent=11 // pred_fallthru
          _
        // Predicated region
        $region21: #{gcn_forward.1} parent=11 // pred_check
          %p197 = pneg %p129
        $region22: #{gcn_forward.1} parent=11 // pred_check_branch
          %199 = sbr.rel (%p197) target = $region24
        $region23: #{gcn_forward.1} parent=11 // pred_region
          _
        $region24: #{gcn_forward.1} parent=11 // pred_fallthru
          _
        // Predicated region
        $region25: #{gcn_forward.1} parent=11 // pred_check
          %p200 = pneg %p150
        $region26: #{gcn_forward.1} parent=11 // pred_check_branch
          %202 = sbr.rel (%p200) target = $region28
        $region27: #{gcn_forward.1} parent=11 // pred_region
          _
        $region28: #{gcn_forward.1} parent=11 // pred_fallthru
          _
      $region12: #{gcn_forward.1} parent=5 // pred_fallthru
        _
      %p203 = scmp.lt.s32.totalorder %s12, 2
      // Predicated region
      $region29: #{gcn_forward.1} parent=5 // pred_check
        %p204 = pneg %p203
      $region30: #{gcn_forward.1} parent=5 // pred_check_branch
        %206 = sbr.rel (%p204) target = $region32
      $region31: #{gcn_forward.1} parent=5 // pred_region
        // Predicated region
        $region33: #{gcn_forward.1} parent=31 // pred_check
          %p207 = pneg %p32
        $region34: #{gcn_forward.1} parent=31 // pred_check_branch
          %209 = sbr.rel (%p207) target = $region36
        $region35: #{gcn_forward.1} parent=31 // pred_region
          %s210 = smul.u32 16, %s12
          %p211 = scmp.lt.s32.totalorder %s210, 31
          %s212 = scalar_select %p211, %s210, 31
          %s213 = smul.addr %s212, 8
          %s214 = scalar_lea.vmem %s0, %s213
          %s215 = smul.u32 16, %s12
        $region36: #{gcn_forward.1} parent=31 // pred_fallthru
          _
        // Predicated region
        $region37: #{gcn_forward.1} parent=31 // pred_check
          %p216 = pneg %p60
        $region38: #{gcn_forward.1} parent=31 // pred_check_branch
          %218 = sbr.rel (%p216) target = $region40
        $region39: #{gcn_forward.1} parent=31 // pred_region
          %s219 = sand.u32 %s50, 1
          %s220 = sand.u32 %s50, 1
          %s221 = smul.addr %s220, 64
          %s222 = scalar_lea.vmem [#allocation2], %s221
          %s223 = smul.u32 16, %s12
          %s224 = smul.addr %s223, 2
          %s225 = sadd.s32 %s12, %s224
          %s226 = smul.addr %s225, 4
          %s227 = scalar_lea.vmem %s1, %s226
          // Predicated region
          $region41: #{gcn_forward.1} parent=39 // pred_check
            _
          $region42: #{gcn_forward.1} parent=39 // pred_check_branch
            %229 = sbr.rel (0) target = $region44
          $region43: #{gcn_forward.1} parent=39 // pred_region
            // Predicated region
            $region45: #{gcn_forward.1} parent=43 // pred_check
              _
            $region46: #{gcn_forward.1} parent=43 // pred_check_branch
              %231 = sbr.rel target = $region48
            $region47: #{gcn_forward.1} parent=43 // pred_region
              // Predicated region
              $region60: #{gcn_forward.1} parent=47 // pred_check
                _
              $region61: #{gcn_forward.1} parent=47 // pred_check_branch
                %276 = sbr.rel (0) target = $region63
              $region62: #{gcn_forward.1} parent=47 // pred_region
                loop: start=0, step=1, limit=1
                $region64: #{gcn_forward.1} parent=62 // loop_pre_header
                  _
                $region65: #{gcn_forward.1} parent=62 // loop_header
                  %s278 = sphi 0, %s282
                  %p279 = scmp.ge.s32.totalorder %s278, 1
                  %s283 = sphi %s227, %s227
                  %s284 = sphi %s222, %s222
                $region66: #{gcn_forward.1} parent=62 // loop_header_branch
                  %281 = sbr.rel (%p279) target = $region70
                $region67: #{gcn_forward.1} parent=62 // loop_body
                  _
                $region68: #{gcn_forward.1} parent=62 // loop_footer
                  %s282 = sadd.s32 1, %s278
                $region69: #{gcn_forward.1} parent=62 // loop_footer_branch
                  %277 = sbr.rel target = $region65
                $region70: #{gcn_forward.1} parent=62 // loop_exit
                  _
                loop: start=0, step=1, limit=1
                $region71: #{gcn_forward.1} parent=62 // loop_pre_header
                  _
                $region72: #{gcn_forward.1} parent=62 // loop_header
                  %s287 = sphi 0, %s291
                  %p288 = scmp.ge.s32.totalorder %s287, 1
                  %s292 = sphi %s227, %s227
                  %s293 = sphi %s222, %s222
                $region73: #{gcn_forward.1} parent=62 // loop_header_branch
                  %290 = sbr.rel (%p288) target = $region77
                $region74: #{gcn_forward.1} parent=62 // loop_body
                  %v294 = vld [vmem:[%s292] sm:$0xf]
                  %295 = vst [vmem:[%s293] sm:$0xf] %v294
                  %v296 = vld [vmem:[%s292 + $0x8] sm:$0xf]
                  %297 = vst [vmem:[%s293 + $0x4] sm:$0xf] %v296
                  %v298 = vld [vmem:[%s292 + $0x10] sm:$0xf]
                  %299 = vst [vmem:[%s293 + $0x8] sm:$0xf] %v298
                  %v300 = vld [vmem:[%s292 + $0x18] sm:$0xf]
                  %301 = vst [vmem:[%s293 + $0xc] sm:$0xf] %v300
                  %v302 = vld [vmem:[%s292 + $0x20] sm:$0xf]
                  %303 = vst [vmem:[%s293 + $0x10] sm:$0xf] %v302
                  %v304 = vld [vmem:[%s292 + $0x28] sm:$0xf]
                  %305 = vst [vmem:[%s293 + $0x14] sm:$0xf] %v304
                  %v306 = vld [vmem:[%s292 + $0x30] sm:$0xf]
                  %307 = vst [vmem:[%s293 + $0x18] sm:$0xf] %v306
                  %v308 = vld [vmem:[%s292 + $0x38] sm:$0xf]
                  %309 = vst [vmem:[%s293 + $0x1c] sm:$0xf] %v308
                  %v310 = vld [vmem:[%s292 + $0x40] sm:$0xf]
                  %311 = vst [vmem:[%s293 + $0x20] sm:$0xf] %v310
                  %v312 = vld [vmem:[%s292 + $0x48] sm:$0xf]
                  %313 = vst [vmem:[%s293 + $0x24] sm:$0xf] %v312
                  %v314 = vld [vmem:[%s292 + $0x50] sm:$0xf]
                  %315 = vst [vmem:[%s293 + $0x28] sm:$0xf] %v314
                  %v316 = vld [vmem:[%s292 + $0x58] sm:$0xf]
                  %317 = vst [vmem:[%s293 + $0x2c] sm:$0xf] %v316
                  %v318 = vld [vmem:[%s292 + $0x60] sm:$0xf]
                  %319 = vst [vmem:[%s293 + $0x30] sm:$0xf] %v318
                  %v320 = vld [vmem:[%s292 + $0x68] sm:$0xf]
                  %321 = vst [vmem:[%s293 + $0x34] sm:$0xf] %v320
                  %v322 = vld [vmem:[%s292 + $0x70] sm:$0xf]
                  %323 = vst [vmem:[%s293 + $0x38] sm:$0xf] %v322
                  %v324 = vld [vmem:[%s292 + $0x78] sm:$0xf]
                  %325 = vst [vmem:[%s293 + $0x3c] sm:$0xf] %v324
                $region75: #{gcn_forward.1} parent=62 // loop_footer
                  %s291 = sadd.s32 1, %s287
                $region76: #{gcn_forward.1} parent=62 // loop_footer_branch
                  %286 = sbr.rel target = $region72
                $region77: #{gcn_forward.1} parent=62 // loop_exit
                  _
              $region63: #{gcn_forward.1} parent=47 // pred_fallthru
                _
            $region48: #{gcn_forward.1} parent=43 // pred_fallthru
              _
            // Predicated region
            $region49: #{gcn_forward.1} parent=43 // pred_check
              _
            $region50: #{gcn_forward.1} parent=43 // pred_check_branch
              %233 = sbr.rel (0) target = $region52
            $region51: #{gcn_forward.1} parent=43 // pred_region
              loop: start=0, step=1, limit=1
              $region53: #{gcn_forward.1} parent=51 // loop_pre_header
                _
              $region54: #{gcn_forward.1} parent=51 // loop_header
                %s236 = sphi 0, %s240
                %p237 = scmp.ge.s32.totalorder %s236, 1
                %s241 = sphi %s227, %s227
                %s242 = sphi %s222, %s222
              $region55: #{gcn_forward.1} parent=51 // loop_header_branch
                %239 = sbr.rel (%p237) target = $region59
              $region56: #{gcn_forward.1} parent=51 // loop_body
                %v243 = vld [vmem:[%s241] sm:$0xf]
                %244 = vst [vmem:[%s242] sm:$0xf] %v243
                %v245 = vld [vmem:[%s241 + $0x8] sm:$0xf]
                %246 = vst [vmem:[%s242 + $0x4] sm:$0xf] %v245
                %v247 = vld [vmem:[%s241 + $0x10] sm:$0xf]
                %248 = vst [vmem:[%s242 + $0x8] sm:$0xf] %v247
                %v249 = vld [vmem:[%s241 + $0x18] sm:$0xf]
                %250 = vst [vmem:[%s242 + $0xc] sm:$0xf] %v249
                %v251 = vld [vmem:[%s241 + $0x20] sm:$0xf]
                %252 = vst [vmem:[%s242 + $0x10] sm:$0xf] %v251
                %v253 = vld [vmem:[%s241 + $0x28] sm:$0xf]
                %254 = vst [vmem:[%s242 + $0x14] sm:$0xf] %v253
                %v255 = vld [vmem:[%s241 + $0x30] sm:$0xf]
                %256 = vst [vmem:[%s242 + $0x18] sm:$0xf] %v255
                %v257 = vld [vmem:[%s241 + $0x38] sm:$0xf]
                %258 = vst [vmem:[%s242 + $0x1c] sm:$0xf] %v257
                %v259 = vld [vmem:[%s241 + $0x40] sm:$0xf]
                %260 = vst [vmem:[%s242 + $0x20] sm:$0xf] %v259
                %v261 = vld [vmem:[%s241 + $0x48] sm:$0xf]
                %262 = vst [vmem:[%s242 + $0x24] sm:$0xf] %v261
                %v263 = vld [vmem:[%s241 + $0x50] sm:$0xf]
                %264 = vst [vmem:[%s242 + $0x28] sm:$0xf] %v263
                %v265 = vld [vmem:[%s241 + $0x58] sm:$0xf]
                %266 = vst [vmem:[%s242 + $0x2c] sm:$0xf] %v265
                %v267 = vld [vmem:[%s241 + $0x60] sm:$0xf]
                %268 = vst [vmem:[%s242 + $0x30] sm:$0xf] %v267
                %v269 = vld [vmem:[%s241 + $0x68] sm:$0xf]
                %270 = vst [vmem:[%s242 + $0x34] sm:$0xf] %v269
                %v271 = vld [vmem:[%s241 + $0x70] sm:$0xf]
                %272 = vst [vmem:[%s242 + $0x38] sm:$0xf] %v271
                %v273 = vld [vmem:[%s241 + $0x78] sm:$0xf]
                %274 = vst [vmem:[%s242 + $0x3c] sm:$0xf] %v273
              $region57: #{gcn_forward.1} parent=51 // loop_footer
                %s240 = sadd.s32 1, %s236
              $region58: #{gcn_forward.1} parent=51 // loop_footer_branch
                %235 = sbr.rel target = $region54
              $region59: #{gcn_forward.1} parent=51 // loop_exit
                _
            $region52: #{gcn_forward.1} parent=43 // pred_fallthru
              _
          $region44: #{gcn_forward.1} parent=39 // pred_fallthru
            _
          %326 = vnop
        $region40: #{gcn_forward.1} parent=31 // pred_fallthru
          _
      $region32: #{gcn_forward.1} parent=5 // pred_fallthru
        _
      %p327 = scmp.le.s32.totalorder 1, %s12
      %p328 = scmp.lt.s32.totalorder %s12, 3
      %p329 = pnand %p327, %p328
      %p330 = pneg %p329
      // Predicated region
      $region78: #{gcn_forward.1} parent=5 // pred_check
        _
      $region79: #{gcn_forward.1} parent=5 // pred_check_branch
        %332 = sbr.rel (%p329) target = $region81
      $region80: #{gcn_forward.1} parent=5 // pred_region
        %s333 = ssub.s32 %s12, 1
        %s334 = sand.u32 %s53, 1
        %s335 = sand.u32 %s53, 1
        %s336 = smul.addr %s335, 64
        %s337 = scalar_lea.vmem [#allocation2], %s336
        // Predicated region
        $region82: #{gcn_forward.1} parent=80 // pred_check
          %p338 = pneg %p66
        $region83: #{gcn_forward.1} parent=80 // pred_check_branch
          %340 = sbr.rel (%p338) target = $region85
        $region84: #{gcn_forward.1} parent=80 // pred_region
          _
        $region85: #{gcn_forward.1} parent=80 // pred_fallthru
          _
        %s341 = smul.u32 16, %s17
        %p342 = scmp.lt.s32.totalorder %s341, 31
        %s343 = scalar_select %p342, %s341, 31
        %s344 = smul.addr %s343, 8
        %s345 = scalar_lea.vmem %s0, %s344
        %p346 = pneg %p38
        %p347 = pneg %p35
        %s348 = sand.u32 %s53, 1
        %s349 = sand.u32 %s53, 1
        %s350 = smul.addr %s349, 64
        %s351 = scalar_lea.vmem [#allocation2], %s350
        %p352 = pneg %p66
        %p353 = pneg %p63
        %p354 = pneg %p87
        %p355 = pneg %p84
        %p356 = pneg %p108
        %p357 = pneg %p105
        %p358 = pneg %p129
        %p359 = pneg %p126
        %p360 = pneg %p150
        %p361 = pneg %p147
        %p362 = pneg %p176
        %p363 = pneg %p173
        %s364 = smul.u32 16, %s17
        %p365 = scmp.lt.s32.totalorder %s364, 31
        %s366 = scalar_select %p365, %s364, 31
        %s367 = smul.addr %s366, 8
        %s368 = scalar_lea.vmem %s6, %s367
        %s369 = smul.u32 16, %s17
        %p370 = scmp.lt.s32.totalorder %s369, 31
        %s371 = scalar_select %p370, %s369, 31
        %s372 = smul.addr %s371, 8
        %s373 = scalar_lea.vmem %s0, %s372
        %s374 = smul.u32 16, %s17
        %s375 = smul.u32 16, %s17
        %s376 = smul.u32 16, %s17
        %p377 = scmp.lt.s32.totalorder %s376, 31
        %s378 = scalar_select %p377, %s376, 31
        %s379 = smul.addr %s378, 8
        %s380 = scalar_lea.vmem %s6, %s379
        %s381 = smul.u32 16, %s17
        %v383 = vld [vmem:[%s373] sm:$0xff]
        %v384 = vld [vmem:[%s373 + $0x8] sm:$0xff]
        %v385 = vld [vmem:[%s373 + $0x10] sm:$0xff]
        %v386 = vld [vmem:[%s373 + $0x18] sm:$0xff]
        %v387 = vld [vmem:[%s373 + $0x20] sm:$0xff]
        %v388 = vld [vmem:[%s373 + $0x28] sm:$0xff]
        %v389 = vld [vmem:[%s373 + $0x30] sm:$0xff]
        %v390 = vld [vmem:[%s373 + $0x38] sm:$0xff]
        %v391 = vld [vmem:[%s373 + $0x40] sm:$0xff]
        %v392 = vld [vmem:[%s373 + $0x48] sm:$0xff]
        %v393 = vld [vmem:[%s373 + $0x50] sm:$0xff]
        %v394 = vld [vmem:[%s373 + $0x58] sm:$0xff]
        %v395 = vld [vmem:[%s373 + $0x60] sm:$0xff]
        %v396 = vld [vmem:[%s373 + $0x68] sm:$0xff]
        %v397 = vld [vmem:[%s373 + $0x70] sm:$0xff]
        %v398 = vld [vmem:[%s373 + $0x78] sm:$0xff]
        %v399 = vcvt.f32.s32.to.zero.pseudo %v383
        %v400 = vcvt.f32.s32.to.zero.pseudo %v384
        %v401 = vcvt.f32.s32.to.zero.pseudo %v385
        %v402 = vcvt.f32.s32.to.zero.pseudo %v386
        %v403 = vcvt.f32.s32.to.zero.pseudo %v387
        %v404 = vcvt.f32.s32.to.zero.pseudo %v388
        %v405 = vcvt.f32.s32.to.zero.pseudo %v389
        %v406 = vcvt.f32.s32.to.zero.pseudo %v390
        %v407 = vcvt.f32.s32.to.zero.pseudo %v391
        %v408 = vcvt.f32.s32.to.zero.pseudo %v392
        %v409 = vcvt.f32.s32.to.zero.pseudo %v393
        %v410 = vcvt.f32.s32.to.zero.pseudo %v394
        %v411 = vcvt.f32.s32.to.zero.pseudo %v395
        %v412 = vcvt.f32.s32.to.zero.pseudo %v396
        %v413 = vcvt.f32.s32.to.zero.pseudo %v397
        %v414 = vcvt.f32.s32.to.zero.pseudo %v398
        %v415 = vld [vmem:[%s337] sm:$0xf]
        %v416 = vld [vmem:[%s337 + $0x4] sm:$0xf]
        %v417 = vld [vmem:[%s337 + $0x8] sm:$0xf]
        %v418 = vld [vmem:[%s337 + $0xc] sm:$0xf]
        %v419 = vld [vmem:[%s337 + $0x10] sm:$0xf]
        %v420 = vld [vmem:[%s337 + $0x14] sm:$0xf]
        %v421 = vld [vmem:[%s337 + $0x18] sm:$0xf]
        %v422 = vld [vmem:[%s337 + $0x1c] sm:$0xf]
        %v423 = vld [vmem:[%s337 + $0x20] sm:$0xf]
        %v424 = vld [vmem:[%s337 + $0x24] sm:$0xf]
        %v425 = vld [vmem:[%s337 + $0x28] sm:$0xf]
        %v426 = vld [vmem:[%s337 + $0x2c] sm:$0xf]
        %v427 = vld [vmem:[%s337 + $0x30] sm:$0xf]
        %v428 = vld [vmem:[%s337 + $0x34] sm:$0xf]
        %v429 = vld [vmem:[%s337 + $0x38] sm:$0xf]
        %v430 = vld [vmem:[%s337 + $0x3c] sm:$0xf]
        %v431 = vcvt.s32.f32 %v399
        %v432 = vcvt.s32.f32 %v400
        %v433 = vcvt.s32.f32 %v401
        %v434 = vcvt.s32.f32 %v402
        %v435 = vcvt.s32.f32 %v403
        %v436 = vcvt.s32.f32 %v404
        %v437 = vcvt.s32.f32 %v405
        %v438 = vcvt.s32.f32 %v406
        %v439 = vcvt.s32.f32 %v407
        %v440 = vcvt.s32.f32 %v408
        %v441 = vcvt.s32.f32 %v409
        %v442 = vcvt.s32.f32 %v410
        %v443 = vcvt.s32.f32 %v411
        %v444 = vcvt.s32.f32 %v412
        %v445 = vcvt.s32.f32 %v413
        %v446 = vcvt.s32.f32 %v414
        %v447 = vpack.c.bf16 %v432, %v431
        %v448 = vpack.c.bf16 %v434, %v433
        %v449 = vpack.c.bf16 %v436, %v435
        %v450 = vpack.c.bf16 %v438, %v437
        %v451 = vpack.c.bf16 %v440, %v439
        %v452 = vpack.c.bf16 %v442, %v441
        %v453 = vpack.c.bf16 %v444, %v443
        %v454 = vpack.c.bf16 %v446, %v445
        %v455 = vld [vmem:[%s2] sm:$0xf]
        %v456 = vld [vmem:[%s2 + $0x4] sm:$0xf]
        %v457 = vld [vmem:[%s2 + $0x8] sm:$0x7]
        %v458 = vld [vmem:[%s3] sm:$0x1]
        %v459 = vlaneseq
        %v460 = vshrl.u32 %v459, 7
        %v461 = vsub.s32 0, %v460
        %v462 = vrot.slane %v458, %v461
        %v466 = vunpack.c.l.b16 %v455
        %v467 = vunpack.c.l.b16 %v456
        %v468 = vunpack.c.l.b16 %v457
        %v469 = vpack.c.b16 %v467, %v466
        %v470 = vpack.c.b16 %v468, %v468
        %vm472 = vcmask 171008
        %v474 = vsel %vm472, %v447, 0
        %v477 = vsel %vm472, %v448, 0
        %v480 = vsel %vm472, %v449, 0
        %v483 = vsel %vm472, %v450, 0
        %v486 = vsel %vm472, %v451, 0
        %v489 = vsel %vm472, %v452, 0
        %v492 = vsel %vm472, %v453, 0
        %v495 = vsel %vm472, %v454, 0
        %vm497 = vcmask 1041408
        %vm498 = vcmask 1042432
        %v499 = vsel %vm497, 4294967295, 65535
        %v500 = vsel %vm498, %v499, 0
        %v502 = vand.u32 %v470, %v500
        %504 = vmatprep.subr.bf16.mxu0 0
        %505 = vmatpush1.bf16.msra.mxu0 %v469
        %506 = vmatprep.subr.bf16.mxu0 0
        %507 = vmatpush1.bf16.msra.mxu0 %v502
        %508 = vmatprep.subr.bf16.mxu0 0
        %509 = vmatpush1.bf16.msra.mxu0 0
        %510 = vmatprep.subr.bf16.mxu0 0
        %511 = vmatpush1.bf16.msra.mxu0 0
        %512 = vmatprep.subr.bf16.mxu0 0
        %513 = vmatpush1.bf16.msra.mxu0 0
        %514 = vmatprep.subr.bf16.mxu0 0
        %515 = vmatpush1.bf16.msra.mxu0 0
        %516 = vmatprep.subr.bf16.mxu0 0
        %517 = vmatpush1.bf16.msra.mxu0 0
        %518 = vmatprep.subr.bf16.mxu0 0
        %519 = vmatpush1.bf16.msra.mxu0 0
        %520 = vmatprep.subr.bf16.mxu0 0
        %521 = vmatpush1.bf16.msra.mxu0 0
        %522 = vmatprep.subr.bf16.mxu0 0
        %523 = vmatpush1.bf16.msra.mxu0 0
        %524 = vmatprep.subr.bf16.mxu0 0
        %525 = vmatpush1.bf16.msra.mxu0 0
        %526 = vmatprep.subr.bf16.mxu0 0
        %527 = vmatpush1.bf16.msra.mxu0 0
        %528 = vmatprep.subr.bf16.mxu0 0
        %529 = vmatpush1.bf16.msra.mxu0 0
        %530 = vmatprep.subr.bf16.mxu0 0
        %531 = vmatpush1.bf16.msra.mxu0 0
        %532 = vmatprep.subr.bf16.mxu0 0
        %533 = vmatpush1.bf16.msra.mxu0 0
        %534 = vmatprep.subr.bf16.mxu0 0
        %535 = vmatpush1.bf16.msra.mxu0 0
        %536 = vmatprep.mubr.bf16.mxu0 0
        %537 = vmatmul.mubr.bf16.gmra.mrb[0].mxu0 %v474
        %v538 = vpop.f32.mrb[0].mxu0
        %v539 = vadd.f32 %v462, %v538
        %v540 = vpop.f32.mrb[0].mxu0
        %v541 = vpop.f32.mrb[0].mxu0
        %v542 = vadd.f32 %v462, %v541
        %v543 = vpop.f32.mrb[0].mxu0
        %544 = vmatprep.mubr.bf16.mxu0 0
        %545 = vmatmul.mubr.bf16.gmra.mrb[0].mxu0 %v477
        %v546 = vpop.f32.mrb[0].mxu0
        %v547 = vadd.f32 %v462, %v546
        %v548 = vpop.f32.mrb[0].mxu0
        %v549 = vpop.f32.mrb[0].mxu0
        %v550 = vadd.f32 %v462, %v549
        %v551 = vpop.f32.mrb[0].mxu0
        %552 = vmatprep.mubr.bf16.mxu0 0
        %553 = vmatmul.mubr.bf16.gmra.mrb[0].mxu0 %v480
        %v554 = vpop.f32.mrb[0].mxu0
        %v555 = vadd.f32 %v462, %v554
        %v556 = vpop.f32.mrb[0].mxu0
        %v557 = vpop.f32.mrb[0].mxu0
        %v558 = vadd.f32 %v462, %v557
        %v559 = vpop.f32.mrb[0].mxu0
        %560 = vmatprep.mubr.bf16.mxu0 0
        %561 = vmatmul.mubr.bf16.gmra.mrb[0].mxu0 %v483
        %v562 = vpop.f32.mrb[0].mxu0
        %v563 = vadd.f32 %v462, %v562
        %v564 = vpop.f32.mrb[0].mxu0
        %v565 = vpop.f32.mrb[0].mxu0
        %v566 = vadd.f32 %v462, %v565
        %v567 = vpop.f32.mrb[0].mxu0
        %568 = vmatprep.mubr.bf16.mxu0 0
        %569 = vmatmul.mubr.bf16.gmra.mrb[0].mxu0 %v486
        %v570 = vpop.f32.mrb[0].mxu0
        %v571 = vadd.f32 %v462, %v570
        %v572 = vpop.f32.mrb[0].mxu0
        %v573 = vpop.f32.mrb[0].mxu0
        %v574 = vadd.f32 %v462, %v573
        %v575 = vpop.f32.mrb[0].mxu0
        %576 = vmatprep.mubr.bf16.mxu0 0
        %577 = vmatmul.mubr.bf16.gmra.mrb[0].mxu0 %v489
        %v578 = vpop.f32.mrb[0].mxu0
        %v579 = vadd.f32 %v462, %v578
        %v580 = vpop.f32.mrb[0].mxu0
        %v581 = vpop.f32.mrb[0].mxu0
        %v582 = vadd.f32 %v462, %v581
        %v583 = vpop.f32.mrb[0].mxu0
        %584 = vmatprep.mubr.bf16.mxu0 0
        %585 = vmatmul.mubr.bf16.gmra.mrb[0].mxu0 %v492
        %v586 = vpop.f32.mrb[0].mxu0
        %v587 = vadd.f32 %v462, %v586
        %v588 = vpop.f32.mrb[0].mxu0
        %v589 = vpop.f32.mrb[0].mxu0
        %v590 = vadd.f32 %v462, %v589
        %v591 = vpop.f32.mrb[0].mxu0
        %592 = vmatprep.mubr.bf16.mxu0 0
        %593 = vmatmul.mubr.bf16.gmra.mrb[0].mxu0 %v495
        %v594 = vpop.f32.mrb[0].mxu0
        %v595 = vadd.f32 %v462, %v594
        %v596 = vpop.f32.mrb[0].mxu0
        %v597 = vpop.f32.mrb[0].mxu0
        %v598 = vadd.f32 %v462, %v597
        %v599 = vpop.f32.mrb[0].mxu0
        %600 = vdwg.mxu0
        %v601 = vpack.c.bf16 %v542, %v539
        %v602 = vpack.c.bf16 %v550, %v547
        %v603 = vpack.c.bf16 %v558, %v555
        %v604 = vpack.c.bf16 %v566, %v563
        %v605 = vpack.c.bf16 %v574, %v571
        %v606 = vpack.c.bf16 %v582, %v579
        %v607 = vpack.c.bf16 %v590, %v587
        %v608 = vpack.c.bf16 %v598, %v595
        %v609 = vld [vmem:[%s3 + $0x1] sm:$0x1]
        %v610 = vlaneseq
        %v611 = vshrl.u32 %v610, 7
        %v612 = vsub.s32 0, %v611
        %v613 = vrot.slane %v609, %v612
        %v630 = vunpack.c.l.b16 %v415
        %v631 = vunpack.c.l.b16 %v416
        %v632 = vunpack.c.l.b16 %v417
        %v633 = vunpack.c.l.b16 %v418
        %v634 = vunpack.c.l.b16 %v419
        %v635 = vunpack.c.l.b16 %v420
        %v636 = vunpack.c.l.b16 %v421
        %v637 = vunpack.c.l.b16 %v422
        %v638 = vunpack.c.l.b16 %v423
        %v639 = vunpack.c.l.b16 %v424
        %v640 = vunpack.c.l.b16 %v425
        %v641 = vunpack.c.l.b16 %v426
        %v642 = vunpack.c.l.b16 %v427
        %v643 = vunpack.c.l.b16 %v428
        %v644 = vunpack.c.l.b16 %v429
        %v645 = vunpack.c.l.b16 %v430
        %v646 = vpack.c.b16 %v631, %v630
        %v647 = vpack.c.b16 %v633, %v632
        %v648 = vpack.c.b16 %v635, %v634
        %v649 = vpack.c.b16 %v637, %v636
        %v650 = vpack.c.b16 %v639, %v638
        %v651 = vpack.c.b16 %v641, %v640
        %v652 = vpack.c.b16 %v643, %v642
        %v653 = vpack.c.b16 %v645, %v644
        %662 = vmatprep.subr.bf16.mxu0 0
        %663 = vmatpush1.bf16.msra.mxu0 %v601
        %664 = vmatprep.subr.bf16.mxu0 0
        %665 = vmatpush1.bf16.msra.mxu0 %v602
        %666 = vmatprep.subr.bf16.mxu0 0
        %667 = vmatpush1.bf16.msra.mxu0 %v603
        %668 = vmatprep.subr.bf16.mxu0 0
        %669 = vmatpush1.bf16.msra.mxu0 %v604
        %670 = vmatprep.subr.bf16.mxu0 0
        %671 = vmatpush1.bf16.msra.mxu0 %v605
        %672 = vmatprep.subr.bf16.mxu0 0
        %673 = vmatpush1.bf16.msra.mxu0 %v606
        %674 = vmatprep.subr.bf16.mxu0 0
        %675 = vmatpush1.bf16.msra.mxu0 %v607
        %676 = vmatprep.subr.bf16.mxu0 0
        %677 = vmatpush1.bf16.msra.mxu0 %v608
        %678 = vmatprep.subr.bf16.mxu0 0
        %679 = vmatpush1.bf16.msra.mxu0 0
        %680 = vmatprep.subr.bf16.mxu0 0
        %681 = vmatpush1.bf16.msra.mxu0 0
        %682 = vmatprep.subr.bf16.mxu0 0
        %683 = vmatpush1.bf16.msra.mxu0 0
        %684 = vmatprep.subr.bf16.mxu0 0
        %685 = vmatpush1.bf16.msra.mxu0 0
        %686 = vmatprep.subr.bf16.mxu0 0
        %687 = vmatpush1.bf16.msra.mxu0 0
        %688 = vmatprep.subr.bf16.mxu0 0
        %689 = vmatpush1.bf16.msra.mxu0 0
        %690 = vmatprep.subr.bf16.mxu0 0
        %691 = vmatpush1.bf16.msra.mxu0 0
        %692 = vmatprep.subr.bf16.mxu0 0
        %693 = vmatpush1.bf16.msra.mxu0 0
        %694 = vmatprep.mubr.bf16.mxu0 0
        %695 = vmatmul.mubr.bf16.gmra.mrb[0].mxu0 %v646
        %v696 = vpop.f32.mrb[0].mxu0
        %v697 = vadd.f32 %v613, %v696
        %v698 = vpop.f32.mrb[0].mxu0
        %v699 = vpop.f32.mrb[0].mxu0
        %v700 = vadd.f32 %v613, %v699
        %v701 = vpop.f32.mrb[0].mxu0
        %702 = vmatprep.mubr.bf16.mxu0 0
        %703 = vmatmul.mubr.bf16.gmra.mrb[0].mxu0 %v647
        %v704 = vpop.f32.mrb[0].mxu0
        %v705 = vadd.f32 %v613, %v704
        %v706 = vpop.f32.mrb[0].mxu0
        %v707 = vpop.f32.mrb[0].mxu0
        %v708 = vadd.f32 %v613, %v707
        %v709 = vpop.f32.mrb[0].mxu0
        %710 = vmatprep.mubr.bf16.mxu0 0
        %711 = vmatmul.mubr.bf16.gmra.mrb[0].mxu0 %v648
        %v712 = vpop.f32.mrb[0].mxu0
        %v713 = vadd.f32 %v613, %v712
        %v714 = vpop.f32.mrb[0].mxu0
        %v715 = vpop.f32.mrb[0].mxu0
        %v716 = vadd.f32 %v613, %v715
        %v717 = vpop.f32.mrb[0].mxu0
        %718 = vmatprep.mubr.bf16.mxu0 0
        %719 = vmatmul.mubr.bf16.gmra.mrb[0].mxu0 %v649
        %v720 = vpop.f32.mrb[0].mxu0
        %v721 = vadd.f32 %v613, %v720
        %v722 = vpop.f32.mrb[0].mxu0
        %v723 = vpop.f32.mrb[0].mxu0
        %v724 = vadd.f32 %v613, %v723
        %v725 = vpop.f32.mrb[0].mxu0
        %726 = vmatprep.mubr.bf16.mxu0 0
        %727 = vmatmul.mubr.bf16.gmra.mrb[0].mxu0 %v650
        %v728 = vpop.f32.mrb[0].mxu0
        %v729 = vadd.f32 %v613, %v728
        %v730 = vpop.f32.mrb[0].mxu0
        %v731 = vpop.f32.mrb[0].mxu0
        %v732 = vadd.f32 %v613, %v731
        %v733 = vpop.f32.mrb[0].mxu0
        %734 = vmatprep.mubr.bf16.mxu0 0
        %735 = vmatmul.mubr.bf16.gmra.mrb[0].mxu0 %v651
        %v736 = vpop.f32.mrb[0].mxu0
        %v737 = vadd.f32 %v613, %v736
        %v738 = vpop.f32.mrb[0].mxu0
        %v739 = vpop.f32.mrb[0].mxu0
        %v740 = vadd.f32 %v613, %v739
        %v741 = vpop.f32.mrb[0].mxu0
        %742 = vmatprep.mubr.bf16.mxu0 0
        %743 = vmatmul.mubr.bf16.gmra.mrb[0].mxu0 %v652
        %v744 = vpop.f32.mrb[0].mxu0
        %v745 = vadd.f32 %v613, %v744
        %v746 = vpop.f32.mrb[0].mxu0
        %v747 = vpop.f32.mrb[0].mxu0
        %v748 = vadd.f32 %v613, %v747
        %v749 = vpop.f32.mrb[0].mxu0
        %750 = vmatprep.mubr.bf16.mxu0 0
        %751 = vmatmul.mubr.bf16.gmra.mrb[0].mxu0 %v653
        %v752 = vpop.f32.mrb[0].mxu0
        %v753 = vadd.f32 %v613, %v752
        %v754 = vpop.f32.mrb[0].mxu0
        %v755 = vpop.f32.mrb[0].mxu0
        %v756 = vadd.f32 %v613, %v755
        %v757 = vpop.f32.mrb[0].mxu0
        %758 = vdwg.mxu0
        %v759 = vmax.f32 %v697, 0.0
        %v760 = vmax.f32 %v700, 0.0
        %v761 = vmax.f32 %v705, 0.0
        %v762 = vmax.f32 %v708, 0.0
        %v763 = vmax.f32 %v713, 0.0
        %v764 = vmax.f32 %v716, 0.0
        %v765 = vmax.f32 %v721, 0.0
        %v766 = vmax.f32 %v724, 0.0
        %v767 = vmax.f32 %v729, 0.0
        %v768 = vmax.f32 %v732, 0.0
        %v769 = vmax.f32 %v737, 0.0
        %v770 = vmax.f32 %v740, 0.0
        %v771 = vmax.f32 %v745, 0.0
        %v772 = vmax.f32 %v748, 0.0
        %v773 = vmax.f32 %v753, 0.0
        %v774 = vmax.f32 %v756, 0.0
        %v775 = vpack.c.bf16 %v760, %v759
        %v776 = vpack.c.bf16 %v762, %v761
        %v777 = vpack.c.bf16 %v764, %v763
        %v778 = vpack.c.bf16 %v766, %v765
        %v779 = vpack.c.bf16 %v768, %v767
        %v780 = vpack.c.bf16 %v770, %v769
        %v781 = vpack.c.bf16 %v772, %v771
        %v782 = vpack.c.bf16 %v774, %v773
        %v783 = vld [vmem:[%s4] sm:$0xf]
        %v784 = vld [vmem:[%s4 + $0x4] sm:$0xf]
        %v787 = vunpack.c.l.b16 %v783
        %v788 = vunpack.c.l.b16 %v784
        %v789 = vpack.c.b16 %v788, %v787
        %vm791 = vcmask 130048
        %v793 = vsel %vm791, %v775, 0
        %v796 = vsel %vm791, %v776, 0
        %v799 = vsel %vm791, %v777, 0
        %v802 = vsel %vm791, %v778, 0
        %v805 = vsel %vm791, %v779, 0
        %v808 = vsel %vm791, %v780, 0
        %v811 = vsel %vm791, %v781, 0
        %v814 = vsel %vm791, %v782, 0
        %816 = vmatprep.subr.bf16.mxu0 0
        %817 = vmatpush1.bf16.msra.mxu0 %v789
        %818 = vmatprep.subr.bf16.mxu0 0
        %819 = vmatpush1.bf16.msra.mxu0 0
        %820 = vmatprep.subr.bf16.mxu0 0
        %821 = vmatpush1.bf16.msra.mxu0 0
        %822 = vmatprep.subr.bf16.mxu0 0
        %823 = vmatpush1.bf16.msra.mxu0 0
        %824 = vmatprep.subr.bf16.mxu0 0
        %825 = vmatpush1.bf16.msra.mxu0 0
        %826 = vmatprep.subr.bf16.mxu0 0
        %827 = vmatpush1.bf16.msra.mxu0 0
        %828 = vmatprep.subr.bf16.mxu0 0
        %829 = vmatpush1.bf16.msra.mxu0 0
        %830 = vmatprep.subr.bf16.mxu0 0
        %831 = vmatpush1.bf16.msra.mxu0 0
        %832 = vmatprep.subr.bf16.mxu0 0
        %833 = vmatpush1.bf16.msra.mxu0 0
        %834 = vmatprep.subr.bf16.mxu0 0
        %835 = vmatpush1.bf16.msra.mxu0 0
        %836 = vmatprep.subr.bf16.mxu0 0
        %837 = vmatpush1.bf16.msra.mxu0 0
        %838 = vmatprep.subr.bf16.mxu0 0
        %839 = vmatpush1.bf16.msra.mxu0 0
        %840 = vmatprep.subr.bf16.mxu0 0
        %841 = vmatpush1.bf16.msra.mxu0 0
        %842 = vmatprep.subr.bf16.mxu0 0
        %843 = vmatpush1.bf16.msra.mxu0 0
        %844 = vmatprep.subr.bf16.mxu0 0
        %845 = vmatpush1.bf16.msra.mxu0 0
        %846 = vmatprep.subr.bf16.mxu0 0
        %847 = vmatpush1.bf16.msra.mxu0 0
        %848 = vmatprep.mubr.bf16.mxu0 0
        %849 = vmatmul.mubr.bf16.gmra.mrb[0].mxu0 %v793
        %v850 = vpop.f32.mrb[0].mxu0
        %v851 = vadd.f32 0.0, %v850
        %v852 = vpop.f32.mrb[0].mxu0
        %v853 = vpop.f32.mrb[0].mxu0
        %v854 = vadd.f32 0.0, %v853
        %v855 = vpop.f32.mrb[0].mxu0
        %856 = vmatprep.mubr.bf16.mxu0 0
        %857 = vmatmul.mubr.bf16.gmra.mrb[0].mxu0 %v796
        %v858 = vpop.f32.mrb[0].mxu0
        %v859 = vadd.f32 0.0, %v858
        %v860 = vpop.f32.mrb[0].mxu0
        %v861 = vpop.f32.mrb[0].mxu0
        %v862 = vadd.f32 0.0, %v861
        %v863 = vpop.f32.mrb[0].mxu0
        %864 = vmatprep.mubr.bf16.mxu0 0
        %865 = vmatmul.mubr.bf16.gmra.mrb[0].mxu0 %v799
        %v866 = vpop.f32.mrb[0].mxu0
        %v867 = vadd.f32 0.0, %v866
        %v868 = vpop.f32.mrb[0].mxu0
        %v869 = vpop.f32.mrb[0].mxu0
        %v870 = vadd.f32 0.0, %v869
        %v871 = vpop.f32.mrb[0].mxu0
        %872 = vmatprep.mubr.bf16.mxu0 0
        %873 = vmatmul.mubr.bf16.gmra.mrb[0].mxu0 %v802
        %v874 = vpop.f32.mrb[0].mxu0
        %v875 = vadd.f32 0.0, %v874
        %v876 = vpop.f32.mrb[0].mxu0
        %v877 = vpop.f32.mrb[0].mxu0
        %v878 = vadd.f32 0.0, %v877
        %v879 = vpop.f32.mrb[0].mxu0
        %880 = vmatprep.mubr.bf16.mxu0 0
        %881 = vmatmul.mubr.bf16.gmra.mrb[0].mxu0 %v805
        %v882 = vpop.f32.mrb[0].mxu0
        %v883 = vadd.f32 0.0, %v882
        %v884 = vpop.f32.mrb[0].mxu0
        %v885 = vpop.f32.mrb[0].mxu0
        %v886 = vadd.f32 0.0, %v885
        %v887 = vpop.f32.mrb[0].mxu0
        %888 = vmatprep.mubr.bf16.mxu0 0
        %889 = vmatmul.mubr.bf16.gmra.mrb[0].mxu0 %v808
        %v890 = vpop.f32.mrb[0].mxu0
        %v891 = vadd.f32 0.0, %v890
        %v892 = vpop.f32.mrb[0].mxu0
        %v893 = vpop.f32.mrb[0].mxu0
        %v894 = vadd.f32 0.0, %v893
        %v895 = vpop.f32.mrb[0].mxu0
        %896 = vmatprep.mubr.bf16.mxu0 0
        %897 = vmatmul.mubr.bf16.gmra.mrb[0].mxu0 %v811
        %v898 = vpop.f32.mrb[0].mxu0
        %v899 = vadd.f32 0.0, %v898
        %v900 = vpop.f32.mrb[0].mxu0
        %v901 = vpop.f32.mrb[0].mxu0
        %v902 = vadd.f32 0.0, %v901
        %v903 = vpop.f32.mrb[0].mxu0
        %904 = vmatprep.mubr.bf16.mxu0 0
        %905 = vmatmul.mubr.bf16.gmra.mrb[0].mxu0 %v814
        %v906 = vpop.f32.mrb[0].mxu0
        %v907 = vadd.f32 0.0, %v906
        %v908 = vpop.f32.mrb[0].mxu0
        %v909 = vpop.f32.mrb[0].mxu0
        %v910 = vadd.f32 0.0, %v909
        %v911 = vpop.f32.mrb[0].mxu0
        %912 = vdwg.mxu0
        %v913 = vpack.c.bf16 %v854, %v851
        %v914 = vpack.c.bf16 %v862, %v859
        %v915 = vpack.c.bf16 %v870, %v867
        %v916 = vpack.c.bf16 %v878, %v875
        %v917 = vpack.c.bf16 %v886, %v883
        %v918 = vpack.c.bf16 %v894, %v891
        %v919 = vpack.c.bf16 %v902, %v899
        %v920 = vpack.c.bf16 %v910, %v907
        %v921 = vld [vmem:[%s5] sm:$0x1]
        %v923 = vlaneseq
        %v924 = vshrl.u32 %v923, 7
        %v925 = vsub.s32 0, %v924
        %v926 = vrot.slane %v921, %v925
        %928 = vmatprep.subr.bf16.mxu0 0
        %929 = vmatpush1.bf16.msra.mxu0 %v913
        %930 = vmatprep.subr.bf16.mxu0 0
        %931 = vmatpush1.bf16.msra.mxu0 %v914
        %932 = vmatprep.subr.bf16.mxu0 0
        %933 = vmatpush1.bf16.msra.mxu0 %v915
        %934 = vmatprep.subr.bf16.mxu0 0
        %935 = vmatpush1.bf16.msra.mxu0 %v916
        %936 = vmatprep.subr.bf16.mxu0 0
        %937 = vmatpush1.bf16.msra.mxu0 %v917
        %938 = vmatprep.subr.bf16.mxu0 0
        %939 = vmatpush1.bf16.msra.mxu0 %v918
        %940 = vmatprep.subr.bf16.mxu0 0
        %941 = vmatpush1.bf16.msra.mxu0 %v919
        %942 = vmatprep.subr.bf16.mxu0 0
        %943 = vmatpush1.bf16.msra.mxu0 %v920
        %944 = vmatprep.subr.bf16.mxu0 0
        %945 = vmatpush1.bf16.msra.mxu0 0
        %946 = vmatprep.subr.bf16.mxu0 0
        %947 = vmatpush1.bf16.msra.mxu0 0
        %948 = vmatprep.subr.bf16.mxu0 0
        %949 = vmatpush1.bf16.msra.mxu0 0
        %950 = vmatprep.subr.bf16.mxu0 0
        %951 = vmatpush1.bf16.msra.mxu0 0
        %952 = vmatprep.subr.bf16.mxu0 0
        %953 = vmatpush1.bf16.msra.mxu0 0
        %954 = vmatprep.subr.bf16.mxu0 0
        %955 = vmatpush1.bf16.msra.mxu0 0
        %956 = vmatprep.subr.bf16.mxu0 0
        %957 = vmatpush1.bf16.msra.mxu0 0
        %958 = vmatprep.subr.bf16.mxu0 0
        %959 = vmatpush1.bf16.msra.mxu0 0
        %960 = vmatprep.mubr.bf16.mxu0 0
        %961 = vmatmul.mubr.bf16.gmra.mrb[0].mxu0 %v646
        %v962 = vpop.f32.mrb[0].mxu0
        %v963 = vadd.f32 %v926, %v962
        %v964 = vpop.f32.mrb[0].mxu0
        %v965 = vpop.f32.mrb[0].mxu0
        %v966 = vadd.f32 %v926, %v965
        %v967 = vpop.f32.mrb[0].mxu0
        %968 = vmatprep.mubr.bf16.mxu0 0
        %969 = vmatmul.mubr.bf16.gmra.mrb[0].mxu0 %v647
        %v970 = vpop.f32.mrb[0].mxu0
        %v971 = vadd.f32 %v926, %v970
        %v972 = vpop.f32.mrb[0].mxu0
        %v973 = vpop.f32.mrb[0].mxu0
        %v974 = vadd.f32 %v926, %v973
        %v975 = vpop.f32.mrb[0].mxu0
        %976 = vmatprep.mubr.bf16.mxu0 0
        %977 = vmatmul.mubr.bf16.gmra.mrb[0].mxu0 %v648
        %v978 = vpop.f32.mrb[0].mxu0
        %v979 = vadd.f32 %v926, %v978
        %v980 = vpop.f32.mrb[0].mxu0
        %v981 = vpop.f32.mrb[0].mxu0
        %v982 = vadd.f32 %v926, %v981
        %v983 = vpop.f32.mrb[0].mxu0
        %984 = vmatprep.mubr.bf16.mxu0 0
        %985 = vmatmul.mubr.bf16.gmra.mrb[0].mxu0 %v649
        %v986 = vpop.f32.mrb[0].mxu0
        %v987 = vadd.f32 %v926, %v986
        %v988 = vpop.f32.mrb[0].mxu0
        %v989 = vpop.f32.mrb[0].mxu0
        %v990 = vadd.f32 %v926, %v989
        %v991 = vpop.f32.mrb[0].mxu0
        %992 = vmatprep.mubr.bf16.mxu0 0
        %993 = vmatmul.mubr.bf16.gmra.mrb[0].mxu0 %v650
        %v994 = vpop.f32.mrb[0].mxu0
        %v995 = vadd.f32 %v926, %v994
        %v996 = vpop.f32.mrb[0].mxu0
        %v997 = vpop.f32.mrb[0].mxu0
        %v998 = vadd.f32 %v926, %v997
        %v999 = vpop.f32.mrb[0].mxu0
        %1000 = vmatprep.mubr.bf16.mxu0 0
        %1001 = vmatmul.mubr.bf16.gmra.mrb[0].mxu0 %v651
        %v1002 = vpop.f32.mrb[0].mxu0
        %v1003 = vadd.f32 %v926, %v1002
        %v1004 = vpop.f32.mrb[0].mxu0
        %v1005 = vpop.f32.mrb[0].mxu0
        %v1006 = vadd.f32 %v926, %v1005
        %v1007 = vpop.f32.mrb[0].mxu0
        %1008 = vmatprep.mubr.bf16.mxu0 0
        %1009 = vmatmul.mubr.bf16.gmra.mrb[0].mxu0 %v652
        %v1010 = vpop.f32.mrb[0].mxu0
        %v1011 = vadd.f32 %v926, %v1010
        %v1012 = vpop.f32.mrb[0].mxu0
        %v1013 = vpop.f32.mrb[0].mxu0
        %v1014 = vadd.f32 %v926, %v1013
        %v1015 = vpop.f32.mrb[0].mxu0
        %1016 = vmatprep.mubr.bf16.mxu0 0
        %1017 = vmatmul.mubr.bf16.gmra.mrb[0].mxu0 %v653
        %v1018 = vpop.f32.mrb[0].mxu0
        %v1019 = vadd.f32 %v926, %v1018
        %v1020 = vpop.f32.mrb[0].mxu0
        %v1021 = vpop.f32.mrb[0].mxu0
        %v1022 = vadd.f32 %v926, %v1021
        %v1023 = vpop.f32.mrb[0].mxu0
        %1024 = vdwg.mxu0
        %v1025 = vlaneseq
        %v1026 = vand.u32 %v1025, 127
        %vm1027 = vcmp.lt.s32.totalorder %v1026, 6
        %v1028 = vsel %vm1027, %v963, -inf
        %v1029 = vsel %vm1027, %v966, -inf
        %v1030 = vsel %vm1027, %v971, -inf
        %v1031 = vsel %vm1027, %v974, -inf
        %v1032 = vsel %vm1027, %v979, -inf
        %v1033 = vsel %vm1027, %v982, -inf
        %v1034 = vsel %vm1027, %v987, -inf
        %v1035 = vsel %vm1027, %v990, -inf
        %v1036 = vsel %vm1027, %v995, -inf
        %v1037 = vsel %vm1027, %v998, -inf
        %v1038 = vsel %vm1027, %v1003, -inf
        %v1039 = vsel %vm1027, %v1006, -inf
        %v1040 = vsel %vm1027, %v1011, -inf
        %v1041 = vsel %vm1027, %v1014, -inf
        %v1042 = vsel %vm1027, %v1019, -inf
        %v1043 = vsel %vm1027, %v1022, -inf
        %1044 = vmax.xlane.f32.xlu0 %v1028
        %v1045 = vpop.xlane.xlu0 %1044
        %1046 = vmax.xlane.f32.xlu0 %v1029
        %v1047 = vpop.xlane.xlu0 %1046
        %1048 = vmax.xlane.f32.xlu0 %v1030
        %v1049 = vpop.xlane.xlu0 %1048
        %1050 = vmax.xlane.f32.xlu0 %v1031
        %v1051 = vpop.xlane.xlu0 %1050
        %1052 = vmax.xlane.f32.xlu0 %v1032
        %v1053 = vpop.xlane.xlu0 %1052
        %1054 = vmax.xlane.f32.xlu0 %v1033
        %v1055 = vpop.xlane.xlu0 %1054
        %1056 = vmax.xlane.f32.xlu0 %v1034
        %v1057 = vpop.xlane.xlu0 %1056
        %1058 = vmax.xlane.f32.xlu0 %v1035
        %v1059 = vpop.xlane.xlu0 %1058
        %1060 = vmax.xlane.f32.xlu0 %v1036
        %v1061 = vpop.xlane.xlu0 %1060
        %1062 = vmax.xlane.f32.xlu0 %v1037
        %v1063 = vpop.xlane.xlu0 %1062
        %1064 = vmax.xlane.f32.xlu0 %v1038
        %v1065 = vpop.xlane.xlu0 %1064
        %1066 = vmax.xlane.f32.xlu0 %v1039
        %v1067 = vpop.xlane.xlu0 %1066
        %1068 = vmax.xlane.f32.xlu0 %v1040
        %v1069 = vpop.xlane.xlu0 %1068
        %1070 = vmax.xlane.f32.xlu0 %v1041
        %v1071 = vpop.xlane.xlu0 %1070
        %1072 = vmax.xlane.f32.xlu0 %v1042
        %v1073 = vpop.xlane.xlu0 %1072
        %1074 = vmax.xlane.f32.xlu0 %v1043
        %v1075 = vpop.xlane.xlu0 %1074
        %v1076 = vsub.f32 %v963, %v1045
        %v1077 = vsub.f32 %v966, %v1047
        %v1078 = vsub.f32 %v971, %v1049
        %v1079 = vsub.f32 %v974, %v1051
        %v1080 = vsub.f32 %v979, %v1053
        %v1081 = vsub.f32 %v982, %v1055
        %v1082 = vsub.f32 %v987, %v1057
        %v1083 = vsub.f32 %v990, %v1059
        %v1084 = vsub.f32 %v995, %v1061
        %v1085 = vsub.f32 %v998, %v1063
        %v1086 = vsub.f32 %v1003, %v1065
        %v1087 = vsub.f32 %v1006, %v1067
        %v1088 = vsub.f32 %v1011, %v1069
        %v1089 = vsub.f32 %v1014, %v1071
        %v1090 = vsub.f32 %v1019, %v1073
        %v1091 = vsub.f32 %v1022, %v1075
        %v1092 = vmul.f32 %v1076, 1.442695
        %v1093 = vpow.pop %v1092
        %v1094 = vmul.f32 %v1077, 1.442695
        %v1095 = vpow.pop %v1094
        %v1096 = vmul.f32 %v1078, 1.442695
        %v1097 = vpow.pop %v1096
        %v1098 = vmul.f32 %v1079, 1.442695
        %v1099 = vpow.pop %v1098
        %v1100 = vmul.f32 %v1080, 1.442695
        %v1101 = vpow.pop %v1100
        %v1102 = vmul.f32 %v1081, 1.442695
        %v1103 = vpow.pop %v1102
        %v1104 = vmul.f32 %v1082, 1.442695
        %v1105 = vpow.pop %v1104
        %v1106 = vmul.f32 %v1083, 1.442695
        %v1107 = vpow.pop %v1106
        %v1108 = vmul.f32 %v1084, 1.442695
        %v1109 = vpow.pop %v1108
        %v1110 = vmul.f32 %v1085, 1.442695
        %v1111 = vpow.pop %v1110
        %v1112 = vmul.f32 %v1086, 1.442695
        %v1113 = vpow.pop %v1112
        %v1114 = vmul.f32 %v1087, 1.442695
        %v1115 = vpow.pop %v1114
        %v1116 = vmul.f32 %v1088, 1.442695
        %v1117 = vpow.pop %v1116
        %v1118 = vmul.f32 %v1089, 1.442695
        %v1119 = vpow.pop %v1118
        %v1120 = vmul.f32 %v1090, 1.442695
        %v1121 = vpow.pop %v1120
        %v1122 = vmul.f32 %v1091, 1.442695
        %v1123 = vpow.pop %v1122
        %v1124 = vsel %vm1027, %v1093, 0.0
        %v1125 = vsel %vm1027, %v1095, 0.0
        %v1126 = vsel %vm1027, %v1097, 0.0
        %v1127 = vsel %vm1027, %v1099, 0.0
        %v1128 = vsel %vm1027, %v1101, 0.0
        %v1129 = vsel %vm1027, %v1103, 0.0
        %v1130 = vsel %vm1027, %v1105, 0.0
        %v1131 = vsel %vm1027, %v1107, 0.0
        %v1132 = vsel %vm1027, %v1109, 0.0
        %v1133 = vsel %vm1027, %v1111, 0.0
        %v1134 = vsel %vm1027, %v1113, 0.0
        %v1135 = vsel %vm1027, %v1115, 0.0
        %v1136 = vsel %vm1027, %v1117, 0.0
        %v1137 = vsel %vm1027, %v1119, 0.0
        %v1138 = vsel %vm1027, %v1121, 0.0
        %v1139 = vsel %vm1027, %v1123, 0.0
        %1140 = vadd.xlane.f32.xlu0 %v1124
        %v1141 = vpop.xlane.xlu0 %1140
        %1142 = vadd.xlane.f32.xlu0 %v1125
        %v1143 = vpop.xlane.xlu0 %1142
        %1144 = vadd.xlane.f32.xlu0 %v1126
        %v1145 = vpop.xlane.xlu0 %1144
        %1146 = vadd.xlane.f32.xlu0 %v1127
        %v1147 = vpop.xlane.xlu0 %1146
        %1148 = vadd.xlane.f32.xlu0 %v1128
        %v1149 = vpop.xlane.xlu0 %1148
        %1150 = vadd.xlane.f32.xlu0 %v1129
        %v1151 = vpop.xlane.xlu0 %1150
        %1152 = vadd.xlane.f32.xlu0 %v1130
        %v1153 = vpop.xlane.xlu0 %1152
        %1154 = vadd.xlane.f32.xlu0 %v1131
        %v1155 = vpop.xlane.xlu0 %1154
        %1156 = vadd.xlane.f32.xlu0 %v1132
        %v1157 = vpop.xlane.xlu0 %1156
        %1158 = vadd.xlane.f32.xlu0 %v1133
        %v1159 = vpop.xlane.xlu0 %1158
        %1160 = vadd.xlane.f32.xlu0 %v1134
        %v1161 = vpop.xlane.xlu0 %1160
        %1162 = vadd.xlane.f32.xlu0 %v1135
        %v1163 = vpop.xlane.xlu0 %1162
        %1164 = vadd.xlane.f32.xlu0 %v1136
        %v1165 = vpop.xlane.xlu0 %1164
        %1166 = vadd.xlane.f32.xlu0 %v1137
        %v1167 = vpop.xlane.xlu0 %1166
        %1168 = vadd.xlane.f32.xlu0 %v1138
        %v1169 = vpop.xlane.xlu0 %1168
        %1170 = vadd.xlane.f32.xlu0 %v1139
        %v1171 = vpop.xlane.xlu0 %1170
        %v1172 = vlog2.pop %v1141
        %v1173 = vmul.f32 %v1172, 0.6931472
        %v1174 = vlog2.pop %v1143
        %v1175 = vmul.f32 %v1174, 0.6931472
        %v1176 = vlog2.pop %v1145
        %v1177 = vmul.f32 %v1176, 0.6931472
        %v1178 = vlog2.pop %v1147
        %v1179 = vmul.f32 %v1178, 0.6931472
        %v1180 = vlog2.pop %v1149
        %v1181 = vmul.f32 %v1180, 0.6931472
        %v1182 = vlog2.pop %v1151
        %v1183 = vmul.f32 %v1182, 0.6931472
        %v1184 = vlog2.pop %v1153
        %v1185 = vmul.f32 %v1184, 0.6931472
        %v1186 = vlog2.pop %v1155
        %v1187 = vmul.f32 %v1186, 0.6931472
        %v1188 = vlog2.pop %v1157
        %v1189 = vmul.f32 %v1188, 0.6931472
        %v1190 = vlog2.pop %v1159
        %v1191 = vmul.f32 %v1190, 0.6931472
        %v1192 = vlog2.pop %v1161
        %v1193 = vmul.f32 %v1192, 0.6931472
        %v1194 = vlog2.pop %v1163
        %v1195 = vmul.f32 %v1194, 0.6931472
        %v1196 = vlog2.pop %v1165
        %v1197 = vmul.f32 %v1196, 0.6931472
        %v1198 = vlog2.pop %v1167
        %v1199 = vmul.f32 %v1198, 0.6931472
        %v1200 = vlog2.pop %v1169
        %v1201 = vmul.f32 %v1200, 0.6931472
        %v1202 = vlog2.pop %v1171
        %v1203 = vmul.f32 %v1202, 0.6931472
        %v1204 = vsub.f32 %v1076, %v1173
        %v1205 = vsub.f32 %v1077, %v1175
        %v1206 = vsub.f32 %v1078, %v1177
        %v1207 = vsub.f32 %v1079, %v1179
        %v1208 = vsub.f32 %v1080, %v1181
        %v1209 = vsub.f32 %v1081, %v1183
        %v1210 = vsub.f32 %v1082, %v1185
        %v1211 = vsub.f32 %v1083, %v1187
        %v1212 = vsub.f32 %v1084, %v1189
        %v1213 = vsub.f32 %v1085, %v1191
        %v1214 = vsub.f32 %v1086, %v1193
        %v1215 = vsub.f32 %v1087, %v1195
        %v1216 = vsub.f32 %v1088, %v1197
        %v1217 = vsub.f32 %v1089, %v1199
        %v1218 = vsub.f32 %v1090, %v1201
        %v1219 = vsub.f32 %v1091, %v1203
        %1220 = vst [vmem:[%s380] sm:$0xff] %v1204
        %1221 = vst [vmem:[%s380 + $0x8] sm:$0xff] %v1205
        %1222 = vst [vmem:[%s380 + $0x10] sm:$0xff] %v1206
        %1223 = vst [vmem:[%s380 + $0x18] sm:$0xff] %v1207
        %1224 = vst [vmem:[%s380 + $0x20] sm:$0xff] %v1208
        %1225 = vst [vmem:[%s380 + $0x28] sm:$0xff] %v1209
        %1226 = vst [vmem:[%s380 + $0x30] sm:$0xff] %v1210
        %1227 = vst [vmem:[%s380 + $0x38] sm:$0xff] %v1211
        %1228 = vst [vmem:[%s380 + $0x40] sm:$0xff] %v1212
        %1229 = vst [vmem:[%s380 + $0x48] sm:$0xff] %v1213
        %1230 = vst [vmem:[%s380 + $0x50] sm:$0xff] %v1214
        %1231 = vst [vmem:[%s380 + $0x58] sm:$0xff] %v1215
        %1232 = vst [vmem:[%s380 + $0x60] sm:$0xff] %v1216
        %1233 = vst [vmem:[%s380 + $0x68] sm:$0xff] %v1217
        %1234 = vst [vmem:[%s380 + $0x70] sm:$0xff] %v1218
        %1235 = vst [vmem:[%s380 + $0x78] sm:$0xff] %v1219
        %s1236 = smul.u32 16, %s17
        %p1237 = scmp.lt.s32.totalorder %s1236, 31
        %s1238 = scalar_select %p1237, %s1236, 31
        %s1239 = smul.addr %s1238, 8
        %s1240 = scalar_lea.vmem %s6, %s1239
        // Predicated region
        $region86: #{gcn_forward.1} parent=80 // pred_check
          %p1241 = pneg %p173
        $region87: #{gcn_forward.1} parent=80 // pred_check_branch
          %1243 = sbr.rel (%p1241) target = $region89
        $region88: #{gcn_forward.1} parent=80 // pred_region
          %s1244 = smul.u32 16, %s17
        $region89: #{gcn_forward.1} parent=80 // pred_fallthru
          _
      $region81: #{gcn_forward.1} parent=5 // pred_fallthru
        _
      %p1245 = scmp.le.s32.totalorder 2, %s12
      // Predicated region
      $region90: #{gcn_forward.1} parent=5 // pred_check
        %p1246 = pneg %p1245
      $region91: #{gcn_forward.1} parent=5 // pred_check_branch
        %1248 = sbr.rel (%p1246) target = $region93
      $region92: #{gcn_forward.1} parent=5 // pred_region
        %s1249 = ssub.s32 %s12, 2
        // Predicated region
        $region94: #{gcn_forward.1} parent=92 // pred_check
          %p1250 = pneg %p179
        $region95: #{gcn_forward.1} parent=92 // pred_check_branch
          %1252 = sbr.rel (%p1250) target = $region97
        $region96: #{gcn_forward.1} parent=92 // pred_region
          %s1253 = smul.u32 16, %s18
          %p1254 = scmp.lt.s32.totalorder %s1253, 31
          %s1255 = scalar_select %p1254, %s1253, 31
          %s1256 = smul.addr %s1255, 8
          %s1257 = scalar_lea.vmem %s6, %s1256
        $region97: #{gcn_forward.1} parent=92 // pred_fallthru
          _
      $region93: #{gcn_forward.1} parent=5 // pred_fallthru
        _
    $region6: #{gcn_forward.1} parent=1 // loop_footer
      %s16 = sadd.s32 1, %s12
    $region7: #{gcn_forward.1} parent=1 // loop_footer_branch
      %11 = sbr.rel target = $region3
    $region8: #{gcn_forward.1} parent=1 // loop_exit
      _

</llo_original>
